<compile_context>
chip_gen: v6e
topology: v6e:2x2x1
jax: 0.10.0
libtpu: 0.0.40
codegen_flags: <defaults>
</compile_context>

<pallas_src>
import jax
import jax.numpy as jnp
from jax.experimental import pallas as pl
from jax.experimental.pallas import tpu as pltpu

_SUB = 16          # sublane multiple (bf16-friendly; also fine for f32)
_LANE = 128        # lane width


def _round_up(n, m):
    return ((n + m - 1) // m) * m


def siamese_kernel(e1_ref, e2_ref, w1_ref, b1_ref, w2_ref, b2_ref, o_ref):
    # bf16 loads (HBM traffic halved); elementwise math in f32 (v5e-safe).
    e1 = e1_ref[...].astype(jnp.float32)             # [TB, E]
    e2 = e2_ref[...].astype(jnp.float32)             # [TB, E]
    diff = jnp.abs(e1 - e2)                          # [TB, E]

    # Lane-concat -> single K=3E MXU matmul in bf16 with f32 accumulation.
    x = jnp.concatenate([e1, e2, diff], axis=1).astype(jnp.bfloat16)   # [TB, 3E]
    h = jnp.dot(x, w1_ref[...], preferred_element_type=jnp.float32) + b1_ref[...]
    h = jnp.maximum(h, 0.0)                          # ReLU
    # Dropout(p=0.3): identity in eval mode.

    # Second linear (H -> 1) as VPU mul + XLU lane-reduce (w2 is a [1, H] row;
    # an N=1 MXU matmul would waste the whole output dimension).
    logit = jnp.sum(h * w2_ref[...], axis=-1, keepdims=True) + b2_ref[0, 0]
    o_ref[...] = jax.nn.sigmoid(logit).astype(o_ref.dtype)


def _vmem_plan(E, H, vmem_cap_bytes):
    """Lane/sublane-padded VMEM accounting -> (fixed_bytes, per_row_bytes, tile_max)."""
    lp = lambda n: _round_up(n, _LANE)
    Ep, Cp, Hp = lp(E), lp(3 * E), lp(H)
    bf, f32 = 2, 4
    # Resident weights (count 2 buffers each to be conservative).
    fixed = 2 * (_round_up(3 * E, 16) * Hp * bf      # W1 (bf16)
                 + _round_up(1, 8) * Hp * f32        # b1 (f32)
                 + _round_up(1, 8) * Hp * f32)       # w2 row (f32)
    # Per batch-row bytes.
    per_row = (2 * 2 * Ep * bf          # emb1 + emb2 blocks, double-buffered, bf16
               + 2 * lp(1) * f32        # output block (1 lane pads to 128), 2 bufs
               + Cp * (f32 + bf)        # concat intermediate (f32 + bf16 copy)
               + 2 * Hp * f32)          # hidden f32 + temp
    budget = int(0.75 * vmem_cap_bytes)              # leave compiler headroom
    tile_max = max(_SUB, ((budget - fixed) // per_row) // _SUB * _SUB)
    return fixed, per_row, tile_max


def siamese_forward(emb1, emb2, params, tile_b=4096, min_pallas_batch=512):
    """emb1, emb2: [B, E]. Returns [B, 1] float32."""
    w1, b1, w2_row, b2 = params
    B, E = emb1.shape
    H = w1.shape[1]

    # Tiny batches: launch overhead dominates -> pure XLA path.
    if B < min_pallas_batch:
        pass  # fall through only if forced below
    if B < min_pallas_batch and min_pallas_batch > 0:
        return reference_forward(emb1, emb2, params)

    # HBM-side bf16 for the dominant traffic (embeddings) and the MXU weight.
    emb1 = emb1.astype(jnp.bfloat16)
    emb2 = emb2.astype(jnp.bfloat16)
    w1_bf = w1.astype(jnp.bfloat16)
    b1_f = b1.astype(jnp.float32)
    w2_f = w2_row.astype(jnp.float32)
    b2_f = b2.astype(jnp.float32)

    # Generation-aware VMEM capacity (128 MiB v5e/v6e, 64 MiB v7x).
    try:
        vmem_cap = int(pltpu.get_tpu_info().vmem_capacity_bytes)
    except Exception:  # pragma: no cover - conservative fallback
        vmem_cap = 64 << 20

    fixed_b, per_row_b, tile_max = _vmem_plan(E, H, vmem_cap)

    # Tile sizing: requested -> VMEM cap -> >=2-step cap (megacore) -> batch.
    b_pad = _round_up(B, _SUB)
    tile_req = max(_SUB, _round_up(tile_b, _SUB) if tile_b >= _SUB else _SUB)
    if b_pad >= 2 * _SUB:
        tc_cap = _round_up(pl.cdiv(b_pad, 2), _SUB)   # >=2 grid steps
    else:
        tc_cap = b_pad
    tile_b = max(_SUB, min(tile_req, tile_max, tc_cap, b_pad))

    B_pad = _round_up(B, tile_b)
    if B_pad != B:
        pad = B_pad - B
        emb1 = jnp.pad(emb1, ((0, pad), (0, 0)))
        emb2 = jnp.pad(emb2, ((0, pad), (0, 0)))

    grid = (pl.cdiv(B_pad, tile_b),)

    vmem_limit = int(min(max(int(1.5 * (fixed_b + tile_b * per_row_b)), 32 << 20),
                         vmem_cap))

    cost = pl.CostEstimate(
        flops=2 * B_pad * 3 * E * H + B_pad * (3 * E + 4 * H),
        transcendentals=B_pad,
        bytes_accessed=(2 * 2 * B_pad * E          # bf16 embeddings
                        + 2 * 3 * E * H            # bf16 W1
                        + 4 * (2 * H + 1)          # f32 b1, w2, b2
                        + 4 * B_pad),              # f32 output
    )

    out = pl.pallas_call(
        siamese_kernel,
        out_shape=jax.ShapeDtypeStruct((B_pad, 1), jnp.float32),
        grid=grid,
        in_specs=[
            pl.BlockSpec((tile_b, E), lambda i: (i, 0)),     # emb1 tile (bf16)
            pl.BlockSpec((tile_b, E), lambda i: (i, 0)),     # emb2 tile (bf16)
            pl.BlockSpec((3 * E, H), lambda i: (0, 0)),      # W1 (resident, bf16)
            pl.BlockSpec((1, H), lambda i: (0, 0)),          # b1 (resident, f32)
            pl.BlockSpec((1, H), lambda i: (0, 0)),          # W2 row (resident, f32)
            pl.BlockSpec((1, 1), lambda i: (0, 0),
                         memory_space=pltpu.MemorySpace.SMEM),  # b2 scalar
        ],
        out_specs=pl.BlockSpec((tile_b, 1), lambda i: (i, 0)),
        compiler_params=pltpu.CompilerParams(
            dimension_semantics=("parallel",),
            vmem_limit_bytes=vmem_limit,
        ),
        cost_estimate=cost,
    )(emb1, emb2, w1_bf, b1_f, w2_f, b2_f)

    return out[:B] if B_pad != B else out


def init_params(key, embedding_dim, hidden_dim):
    """Deterministic init mimicking nn.Linear's uniform(-1/sqrt(fan_in), +)."""
    k1, k2, k3, k4 = jax.random.split(key, 4)
    fan1 = embedding_dim * 3
    bound1 = 1.0 / jnp.sqrt(fan1)
    w1 = jax.random.uniform(k1, (fan1, hidden_dim), jnp.float32, -bound1, bound1)
    b1 = jax.random.uniform(k2, (1, hidden_dim), jnp.float32, -bound1, bound1)

    bound2 = 1.0 / jnp.sqrt(hidden_dim)
    # Second layer stored as a [1, H] row (used as VPU mul + lane reduce).
    w2_row = jax.random.uniform(k3, (1, hidden_dim), jnp.float32, -bound2, bound2)
    b2 = jax.random.uniform(k4, (1, 1), jnp.float32, -bound2, bound2)
    return (w1, b1, w2_row, b2)


def reference_forward(emb1, emb2, params):
    """Pure-JAX f32 reference matching the PyTorch forward (eval mode)."""
    w1, b1, w2_row, b2 = params
    e1 = emb1.astype(jnp.float32)
    e2 = emb2.astype(jnp.float32)
    diff = jnp.abs(e1 - e2)
    concat = jnp.concatenate([e1, e2, diff], axis=1)
    h = jnp.maximum(concat @ w1 + b1, 0.0)
    return jax.nn.sigmoid(h @ w2_row.T + b2)


if __name__ == "__main__":
    B = 24     # small demo batch (kernel tiles/pads arbitrary B; 2 grid steps here)
    E = 32     # embedding_dim
    H = 256    # hidden_dim (module default; lane-dense multiple of 128)

    key = jax.random.PRNGKey(0)
    k_e1, k_e2, k_p = jax.random.split(key, 3)
    emb1 = jax.random.normal(k_e1, (B, E), jnp.float32)
    emb2 = jax.random.normal(k_e2, (B, E), jnp.float32)
    params = init_params(k_p, E, H)

    # min_pallas_batch=0 forces the Pallas path for the small demo batch.
    out = siamese_forward(emb1, emb2, params, min_pallas_batch=0)
    out = jax.block_until_ready(out)

    # Reference on the same bf16-rounded inputs the kernel consumes; the
    # remaining difference is the bf16 MXU path -> loosened tolerance.
    e1_bf = emb1.astype(jnp.bfloat16).astype(jnp.float32)
    e2_bf = emb2.astype(jnp.bfloat16).astype(jnp.float32)
    ref = reference_forward(e1_bf, e2_bf, params)

    assert out.shape == (B, 1)
    assert jnp.allclose(out, ref, atol=1e-2, rtol=1e-2), "mismatch vs reference"

    print("KERNEL_OK")
</pallas_src>

<mosaic_0001>
module attributes {stable_mosaic.version = 11 : i64} {
  func.func @siamese_kernel(%arg0: i32, %arg1: memref<16x32xbf16, #tpu.memory_space<vmem>>, %arg2: memref<16x32xbf16, #tpu.memory_space<vmem>>, %arg3: memref<96x256xbf16, #tpu.memory_space<vmem>>, %arg4: memref<1x256xf32, #tpu.memory_space<vmem>>, %arg5: memref<1x256xf32, #tpu.memory_space<vmem>>, %arg6: memref<1x1xf32, #tpu.memory_space<smem>>, %arg7: memref<16x1xf32, #tpu.memory_space<vmem>>) attributes {dimension_semantics = [#tpu.dimension_semantics<parallel>], iteration_bounds = array<i64: 2>, scalar_prefetch = 0 : i64, scratch_operands = 0 : i64, tpu.core_type = #tpu.core_type<tc>, window_params = [{transform_indices = @transform_0, window_bounds = array<i64: 16, 32>}, {transform_indices = @transform_1, window_bounds = array<i64: 16, 32>}, {pipeline_mode = #tpu.pipeline_mode<synchronous>, transform_indices = @transform_2, window_bounds = array<i64: 96, 256>}, {pipeline_mode = #tpu.pipeline_mode<synchronous>, transform_indices = @transform_3, window_bounds = array<i64: 1, 256>}, {pipeline_mode = #tpu.pipeline_mode<synchronous>, transform_indices = @transform_4, window_bounds = array<i64: 1, 256>}, {transform_indices = @transform_5, window_bounds = array<i64: 1, 1>}, {transform_indices = @transform_6, window_bounds = array<i64: 16, 1>}]} {
    %c0 = arith.constant 0 : index
    %c0_0 = arith.constant 0 : index
    %0 = vector.load %arg1[%c0, %c0_0] : memref<16x32xbf16, #tpu.memory_space<vmem>>, vector<16x32xbf16>
    %1 = arith.extf %0 : vector<16x32xbf16> to vector<16x32xf32>
    %c0_1 = arith.constant 0 : index
    %c0_2 = arith.constant 0 : index
    %2 = vector.load %arg2[%c0_1, %c0_2] : memref<16x32xbf16, #tpu.memory_space<vmem>>, vector<16x32xbf16>
    %3 = arith.extf %2 : vector<16x32xbf16> to vector<16x32xf32>
    %4 = arith.subf %1, %3 : vector<16x32xf32>
    %5 = math.absf %4 : vector<16x32xf32>
    %6 = tpu.concatenate %1, %3, %5 in 1 : vector<16x32xf32>, vector<16x32xf32>, vector<16x32xf32> -> vector<16x96xf32>
    %7 = arith.truncf %6 : vector<16x96xf32> to vector<16x96xbf16>
    %c0_3 = arith.constant 0 : index
    %c0_4 = arith.constant 0 : index
    %8 = vector.load %arg3[%c0_3, %c0_4] : memref<96x256xbf16, #tpu.memory_space<vmem>>, vector<96x256xbf16>
    %cst = arith.constant dense<0.000000e+00> : vector<16x256xf32>
    %9 = tpu.matmul %7, %8, %cst {dimension_numbers = #tpu.dot_dimension_numbers<[1], [0], [0], [1], [0, 0, 1, 1], [], []>} : vector<16x96xbf16>, vector<96x256xbf16>, vector<16x256xf32> -> vector<16x256xf32>
    %c0_5 = arith.constant 0 : index
    %c0_6 = arith.constant 0 : index
    %10 = vector.load %arg4[%c0_5, %c0_6] : memref<1x256xf32, #tpu.memory_space<vmem>>, vector<1x256xf32>
    %11 = vector.broadcast %10 : vector<1x256xf32> to vector<16x256xf32>
    %12 = arith.addf %9, %11 : vector<16x256xf32>
    %cst_7 = arith.constant 0.000000e+00 : f32
    %13 = vector.broadcast %cst_7 : f32 to vector<16x256xf32>
    %14 = arith.maximumf %12, %13 : vector<16x256xf32>
    %c0_8 = arith.constant 0 : index
    %c0_9 = arith.constant 0 : index
    %15 = vector.load %arg5[%c0_8, %c0_9] : memref<1x256xf32, #tpu.memory_space<vmem>>, vector<1x256xf32>
    %16 = vector.broadcast %15 : vector<1x256xf32> to vector<16x256xf32>
    %17 = arith.mulf %14, %16 : vector<16x256xf32>
    %cst_10 = arith.constant dense<0.000000e+00> : vector<16xf32>
    %18 = vector.multi_reduction <add>, %17, %cst_10 [1] : vector<16x256xf32> to vector<16xf32>
    %19 = vector.shape_cast %18 : vector<16xf32> to vector<16x1xf32>
    %c0_11 = arith.constant 0 : index
    %c0_12 = arith.constant 0 : index
    %20 = memref.load %arg6[%c0_11, %c0_12] : memref<1x1xf32, #tpu.memory_space<smem>>
    %21 = vector.broadcast %20 : f32 to vector<16x1xf32>
    %22 = arith.addf %19, %21 : vector<16x1xf32>
    %23 = arith.negf %22 : vector<16x1xf32>
    %24 = math.exp %23 : vector<16x1xf32>
    %cst_13 = arith.constant 1.000000e+00 : f32
    %25 = vector.broadcast %cst_13 : f32 to vector<16x1xf32>
    %26 = arith.addf %25, %24 : vector<16x1xf32>
    %27 = arith.divf %25, %26 : vector<16x1xf32>
    %c0_14 = arith.constant 0 : index
    %c0_15 = arith.constant 0 : index
    %28 = vector.load %arg7[%c0_14, %c0_15] : memref<16x1xf32, #tpu.memory_space<vmem>>, vector<16x1xf32>
    tpu.vector_store %arg7[%c0_14, %c0_15], %27 {strides = array<i32>} : memref<16x1xf32, #tpu.memory_space<vmem>>, vector<16x1xf32>,
    return
  }
  func.func @transform_0(%arg0: i32) -> (i32, i32) {
    %c0_i32 = arith.constant 0 : i32
    %c0_i32_0 = arith.constant 0 : i32
    return %arg0, %c0_i32 : i32, i32
  }
  func.func @transform_1(%arg0: i32) -> (i32, i32) {
    %c0_i32 = arith.constant 0 : i32
    %c0_i32_0 = arith.constant 0 : i32
    return %arg0, %c0_i32 : i32, i32
  }
  func.func @transform_2(%arg0: i32) -> (i32, i32) {
    %c0_i32 = arith.constant 0 : i32
    %c0_i32_0 = arith.constant 0 : i32
    %c0_i32_1 = arith.constant 0 : i32
    return %c0_i32, %c0_i32_0 : i32, i32
  }
  func.func @transform_3(%arg0: i32) -> (i32, i32) {
    %c0_i32 = arith.constant 0 : i32
    %c0_i32_0 = arith.constant 0 : i32
    %c0_i32_1 = arith.constant 0 : i32
    return %c0_i32, %c0_i32_0 : i32, i32
  }
  func.func @transform_4(%arg0: i32) -> (i32, i32) {
    %c0_i32 = arith.constant 0 : i32
    %c0_i32_0 = arith.constant 0 : i32
    %c0_i32_1 = arith.constant 0 : i32
    return %c0_i32, %c0_i32_0 : i32, i32
  }
  func.func @transform_5(%arg0: i32) -> (i32, i32) {
    %c0_i32 = arith.constant 0 : i32
    %c0_i32_0 = arith.constant 0 : i32
    %c0_i32_1 = arith.constant 0 : i32
    return %c0_i32, %c0_i32_0 : i32, i32
  }
  func.func @transform_6(%arg0: i32) -> (i32, i32) {
    %c0_i32 = arith.constant 0 : i32
    %c0_i32_0 = arith.constant 0 : i32
    return %arg0, %c0_i32 : i32, i32
  }
}

</mosaic_0001>

<llo_original>
// kernel: tpu_custom_call.1
$region0: #{tpu_custom_call.1}
  #allocation0 [shape = 'u32[]', space=smem, size = 0x4, offset = 0x4, fixed_abs, tag = 'smem constant byte address 0x4 - core index']
  #allocation1 [shape = 'u32[144,128]{1,0:T(1,128)}', space=vmem, size = 0x12000, scoped, tag = 'internal scratch']
  #allocation2 [shape = 'f32[1,1]{1,0:T(1,128)S(6)}', space=smem, size = 0x200, scoped, tag = 'scoped memory for tpu_custom_call.1']
  %s0 = inlined_call_operand.hbm [shape: bf16[32,32], index: 0, kind: input, shape index: {}]
  %s1 = inlined_call_operand.hbm [shape: bf16[32,32], index: 1, kind: input, shape index: {}]
  %s2 = inlined_call_operand.hbm [shape: bf16[96,256], index: 2, kind: input, shape index: {}]
  %s3 = inlined_call_operand.vmem [shape: f32[1,256], index: 3, kind: input, shape index: {}]
  %s4 = inlined_call_operand.vmem [shape: f32[1,256], index: 4, kind: input, shape index: {}]
  %s5 = inlined_call_operand.<no memory space> [shape: f32[1,1], index: 5, kind: input, shape index: {}]
  %s6 = inlined_call_operand.vmem [shape: f32[32,1], index: 6, kind: output, shape index: {}]
  %s7 = sld [smem:[#allocation0]]
  $region69: #{tpu_custom_call.1} parent=0
    _
  %s9 = ssub.s32 1, %s7
  %s10 = scalar_select 0, %s9, %s7
  %11 = sst [smem:[#allocation2]] %s5
  $region1: #{tpu_custom_call.1} parent=0
    #allocation3 [shape = 'u8[8192]{0}', space=vmem, size = 0x2000, scoped, tag = 'input window, operand 0']
    #allocation4 [shape = 's32[2]{0}', space=sflag, size = 0x8, scoped, tag = 'scoped memory for tpu_custom_call.1']
    #allocation5 [shape = 'u8[8192]{0}', space=vmem, size = 0x2000, scoped, tag = 'input window, operand 1']
    #allocation6 [shape = 's32[2]{0}', space=sflag, size = 0x8, scoped, tag = 'scoped memory for tpu_custom_call.1']
    #allocation7 [shape = 'u8[49152]{0}', space=vmem, size = 0xc000, scoped, tag = 'input window, operand 2, single buffered']
    %12 = vsyncpa [#allocation4], 0
    %s13 = scalar_lea.sflag [#allocation4], 1
    %14 = vsyncpa %s13, 0
    %15 = vsyncpa [#allocation6], 0
    %s16 = scalar_lea.sflag [#allocation6], 1
    %17 = vsyncpa %s16, 0
    loop: start=0, step=1, limit=4
    $region2: #{tpu_custom_call.1} parent=1 // loop_pre_header
      _
    $region3: #{tpu_custom_call.1} parent=1 // loop_header
      %s19 = sphi 0, %s23
      %p20 = scmp.ge.s32.totalorder %s19, 4
      %s29 = sphi 0, %s31
      %s32 = sphi 0, %s29
      %s33 = sphi 0, %s32
      %s49 = sphi 0, %s33
      %s55 = sphi 0, %s57
      %s58 = sphi 0, %s55
      %s59 = sphi 0, %s58
      %s75 = sphi 0, %s59
      %s79 = sphi 0, %s79
      %s81 = sphi 0, %s79
      %s82 = sphi 0, %s81
      %s96 = sphi 0, %s82
      %s100 = sphi 0, %s100
      %s102 = sphi 0, %s100
      %s103 = sphi 0, %s102
      %s117 = sphi 0, %s103
      %s121 = sphi 0, %s121
      %s123 = sphi 0, %s121
      %s124 = sphi 0, %s123
      %s138 = sphi 0, %s124
      %s142 = sphi 0, %s142
      %s144 = sphi 0, %s142
      %s145 = sphi 0, %s144
      %s159 = sphi 0, %s145
      %s165 = sphi 0, %s167
      %s168 = sphi 0, %s165
      %s169 = sphi 0, %s168
      %s185 = sphi 0, %s169
    $region4: #{tpu_custom_call.1} parent=1 // loop_header_branch
      %22 = sbr.rel (%p20) target = $region8
    $region5: #{tpu_custom_call.1} parent=1 // loop_body
      %s24 = ssub.s32 %s19, 1
      %s25 = ssub.s32 %s19, 2
      %s26 = sadd.s32 %s19, 1
      %s27 = ssub.s32 %s19, %s26
      %p28 = scmp.eq.s32.totalorder %s27, 0
      %s30 = sadd.s32 %s29, 1
      %s31 = scalar_select %p28, %s29, %s30
      %p34 = pneg %p28
      %p35 = scmp.eq.s32.totalorder %s19, 1
      %p36 = por %p34, %p35
      %p37 = scmp.ne.s32.totalorder %s29, %s32
      %p38 = scmp.eq.s32.totalorder %s19, 0
      %p39 = por %p37, %p38
      %p40 = scmp.ne.s32.totalorder %s29, %s32
      %p41 = scmp.eq.s32.totalorder %s24, 1
      %p42 = por %p40, %p41
      %p43 = scmp.ne.s32.totalorder %s32, %s33
      %p44 = scmp.eq.s32.totalorder %s24, 0
      %p45 = por %p43, %p44
      %p46 = scmp.ne.s32.totalorder %s32, %s33
      %p47 = scmp.eq.s32.totalorder %s25, 1
      %p48 = por %p46, %p47
      %p50 = scmp.ne.s32.totalorder %s33, %s49
      %p51 = scmp.eq.s32.totalorder %s25, 0
      %p52 = por %p50, %p51
      %s53 = ssub.s32 %s19, %s26
      %p54 = scmp.eq.s32.totalorder %s53, 0
      %s56 = sadd.s32 %s55, 1
      %s57 = scalar_select %p54, %s55, %s56
      %p60 = pneg %p54
      %p61 = scmp.eq.s32.totalorder %s19, 1
      %p62 = por %p60, %p61
      %p63 = scmp.ne.s32.totalorder %s55, %s58
      %p64 = scmp.eq.s32.totalorder %s19, 0
      %p65 = por %p63, %p64
      %p66 = scmp.ne.s32.totalorder %s55, %s58
      %p67 = scmp.eq.s32.totalorder %s24, 1
      %p68 = por %p66, %p67
      %p69 = scmp.ne.s32.totalorder %s58, %s59
      %p70 = scmp.eq.s32.totalorder %s24, 0
      %p71 = por %p69, %p70
      %p72 = scmp.ne.s32.totalorder %s58, %s59
      %p73 = scmp.eq.s32.totalorder %s25, 1
      %p74 = por %p72, %p73
      %p76 = scmp.ne.s32.totalorder %s59, %s75
      %p77 = scmp.eq.s32.totalorder %s25, 0
      %p78 = por %p76, %p77
      %s80 = sadd.s32 %s79, 1
      %p83 = scmp.eq.s32.totalorder %s19, 1
      %p84 = scmp.ne.s32.totalorder %s79, %s81
      %p85 = scmp.eq.s32.totalorder %s19, 0
      %p86 = por %p84, %p85
      %p87 = scmp.ne.s32.totalorder %s79, %s81
      %p88 = scmp.eq.s32.totalorder %s24, 1
      %p89 = por %p87, %p88
      %p90 = scmp.ne.s32.totalorder %s81, %s82
      %p91 = scmp.eq.s32.totalorder %s24, 0
      %p92 = por %p90, %p91
      %p93 = scmp.ne.s32.totalorder %s81, %s82
      %p94 = scmp.eq.s32.totalorder %s25, 1
      %p95 = por %p93, %p94
      %p97 = scmp.ne.s32.totalorder %s82, %s96
      %p98 = scmp.eq.s32.totalorder %s25, 0
      %p99 = por %p97, %p98
      %s101 = sadd.s32 %s100, 1
      %p104 = scmp.eq.s32.totalorder %s19, 1
      %p105 = scmp.ne.s32.totalorder %s100, %s102
      %p106 = scmp.eq.s32.totalorder %s19, 0
      %p107 = por %p105, %p106
      %p108 = scmp.ne.s32.totalorder %s100, %s102
      %p109 = scmp.eq.s32.totalorder %s24, 1
      %p110 = por %p108, %p109
      %p111 = scmp.ne.s32.totalorder %s102, %s103
      %p112 = scmp.eq.s32.totalorder %s24, 0
      %p113 = por %p111, %p112
      %p114 = scmp.ne.s32.totalorder %s102, %s103
      %p115 = scmp.eq.s32.totalorder %s25, 1
      %p116 = por %p114, %p115
      %p118 = scmp.ne.s32.totalorder %s103, %s117
      %p119 = scmp.eq.s32.totalorder %s25, 0
      %p120 = por %p118, %p119
      %s122 = sadd.s32 %s121, 1
      %p125 = scmp.eq.s32.totalorder %s19, 1
      %p126 = scmp.ne.s32.totalorder %s121, %s123
      %p127 = scmp.eq.s32.totalorder %s19, 0
      %p128 = por %p126, %p127
      %p129 = scmp.ne.s32.totalorder %s121, %s123
      %p130 = scmp.eq.s32.totalorder %s24, 1
      %p131 = por %p129, %p130
      %p132 = scmp.ne.s32.totalorder %s123, %s124
      %p133 = scmp.eq.s32.totalorder %s24, 0
      %p134 = por %p132, %p133
      %p135 = scmp.ne.s32.totalorder %s123, %s124
      %p136 = scmp.eq.s32.totalorder %s25, 1
      %p137 = por %p135, %p136
      %p139 = scmp.ne.s32.totalorder %s124, %s138
      %p140 = scmp.eq.s32.totalorder %s25, 0
      %p141 = por %p139, %p140
      %s143 = sadd.s32 %s142, 1
      %p146 = scmp.eq.s32.totalorder %s19, 1
      %p147 = scmp.ne.s32.totalorder %s142, %s144
      %p148 = scmp.eq.s32.totalorder %s19, 0
      %p149 = por %p147, %p148
      %p150 = scmp.ne.s32.totalorder %s142, %s144
      %p151 = scmp.eq.s32.totalorder %s24, 1
      %p152 = por %p150, %p151
      %p153 = scmp.ne.s32.totalorder %s144, %s145
      %p154 = scmp.eq.s32.totalorder %s24, 0
      %p155 = por %p153, %p154
      %p156 = scmp.ne.s32.totalorder %s144, %s145
      %p157 = scmp.eq.s32.totalorder %s25, 1
      %p158 = por %p156, %p157
      %p160 = scmp.ne.s32.totalorder %s145, %s159
      %p161 = scmp.eq.s32.totalorder %s25, 0
      %p162 = por %p160, %p161
      %s163 = ssub.s32 %s19, %s26
      %p164 = scmp.eq.s32.totalorder %s163, 0
      %s166 = sadd.s32 %s165, 1
      %s167 = scalar_select %p164, %s165, %s166
      %p170 = pneg %p164
      %p171 = scmp.eq.s32.totalorder %s19, 1
      %p172 = por %p170, %p171
      %p173 = scmp.ne.s32.totalorder %s165, %s168
      %p174 = scmp.eq.s32.totalorder %s19, 0
      %p175 = por %p173, %p174
      %p176 = scmp.ne.s32.totalorder %s165, %s168
      %p177 = scmp.eq.s32.totalorder %s24, 1
      %p178 = por %p176, %p177
      %p179 = scmp.ne.s32.totalorder %s168, %s169
      %p180 = scmp.eq.s32.totalorder %s24, 0
      %p181 = por %p179, %p180
      %p182 = scmp.ne.s32.totalorder %s168, %s169
      %p183 = scmp.eq.s32.totalorder %s25, 1
      %p184 = por %p182, %p183
      %p186 = scmp.ne.s32.totalorder %s169, %s185
      %p187 = scmp.eq.s32.totalorder %s25, 0
      %p188 = por %p186, %p187
      %p189 = scmp.le.s32.totalorder 1, %s19
      %p190 = scmp.lt.s32.totalorder %s19, 3
      %p191 = pnand %p189, %p190
      %p192 = pneg %p191
      // Predicated region
      $region9: #{tpu_custom_call.1} parent=5 // pred_check
        _
      $region10: #{tpu_custom_call.1} parent=5 // pred_check_branch
        %194 = sbr.rel (%p191) target = $region12
      $region11: #{tpu_custom_call.1} parent=5 // pred_region
        %s195 = ssub.s32 %s19, 1
        // Predicated region
        $region13: #{tpu_custom_call.1} parent=11 // pred_check
          %p196 = pneg %p92
        $region14: #{tpu_custom_call.1} parent=11 // pred_check_branch
          %198 = sbr.rel (%p196) target = $region16
        $region15: #{tpu_custom_call.1} parent=11 // pred_region
          %s200 = ssub.s32 1536, 1536
          %201 = vsyncadd [#allocation6], %s200
          %s202 = sshll.u32 [#allocation7], 4
          %s203 = int_to_ptr.vmem [resolvable:$true] %s202
          %208 = dma.hbm_to_vmem [thread:$0]  %s2, 1536, %s203, [#allocation6], 128, 128, 8
        $region16: #{tpu_custom_call.1} parent=11 // pred_fallthru
          _
        // Predicated region
        $region17: #{tpu_custom_call.1} parent=11 // pred_check
          %p209 = pneg %p113
        $region18: #{tpu_custom_call.1} parent=11 // pred_check_branch
          %211 = sbr.rel (%p209) target = $region20
        $region19: #{tpu_custom_call.1} parent=11 // pred_region
          _
        $region20: #{tpu_custom_call.1} parent=11 // pred_fallthru
          _
        // Predicated region
        $region21: #{tpu_custom_call.1} parent=11 // pred_check
          %p212 = pneg %p134
        $region22: #{tpu_custom_call.1} parent=11 // pred_check_branch
          %214 = sbr.rel (%p212) target = $region24
        $region23: #{tpu_custom_call.1} parent=11 // pred_region
          _
        $region24: #{tpu_custom_call.1} parent=11 // pred_fallthru
          _
        // Predicated region
        $region25: #{tpu_custom_call.1} parent=11 // pred_check
          %p215 = pneg %p155
        $region26: #{tpu_custom_call.1} parent=11 // pred_check_branch
          %217 = sbr.rel (%p215) target = $region28
        $region27: #{tpu_custom_call.1} parent=11 // pred_region
          _
        $region28: #{tpu_custom_call.1} parent=11 // pred_fallthru
          _
      $region12: #{tpu_custom_call.1} parent=5 // pred_fallthru
        _
      %p218 = scmp.lt.s32.totalorder %s19, 2
      // Predicated region
      $region29: #{tpu_custom_call.1} parent=5 // pred_check
        %p219 = pneg %p218
      $region30: #{tpu_custom_call.1} parent=5 // pred_check_branch
        %221 = sbr.rel (%p219) target = $region32
      $region31: #{tpu_custom_call.1} parent=5 // pred_region
        // Predicated region
        $region33: #{tpu_custom_call.1} parent=31 // pred_check
          %p222 = pneg %p39
        $region34: #{tpu_custom_call.1} parent=31 // pred_check_branch
          %224 = sbr.rel (%p222) target = $region36
        $region35: #{tpu_custom_call.1} parent=31 // pred_region
          %s225 = sand.u32 %s29, 1
          %s226 = scalar_lea.sflag [#allocation4], %s225
          %s227 = sand.u32 %s29, 1
          %s228 = smul.addr %s227, 8
          %s229 = scalar_lea.vmem [#allocation3], %s228
          %s230 = smul.u32 2, %s19
          %s232 = ssub.s32 128, 128
          %233 = vsyncadd %s226, %s232
          %s234 = smul.addr %s230, 64
          %s235 = scalar_lea.hbm %s0, %s234
          %s236 = sshll.u32 %s229, 4
          %s237 = int_to_ptr.vmem [resolvable:$true] %s236
          %242 = dma.hbm_to_vmem [thread:$0]  %s235, 128, %s237, %s226, 64, 64, 4
        $region36: #{tpu_custom_call.1} parent=31 // pred_fallthru
          _
        // Predicated region
        $region37: #{tpu_custom_call.1} parent=31 // pred_check
          %p243 = pneg %p65
        $region38: #{tpu_custom_call.1} parent=31 // pred_check_branch
          %245 = sbr.rel (%p243) target = $region40
        $region39: #{tpu_custom_call.1} parent=31 // pred_region
          %s246 = sand.u32 %s19, 1
          %s247 = scalar_lea.sflag [#allocation6], %s246
          %s248 = sand.u32 %s55, 1
          %s249 = smul.addr %s248, 8
          %s250 = scalar_lea.vmem [#allocation5], %s249
          %s251 = smul.u32 2, %s19
          %s253 = ssub.s32 128, 128
          %254 = vsyncadd %s247, %s253
          %s255 = smul.addr %s251, 64
          %s256 = scalar_lea.hbm %s1, %s255
          %s257 = sshll.u32 %s250, 4
          %s258 = int_to_ptr.vmem [resolvable:$true] %s257
          %263 = dma.hbm_to_vmem [thread:$0]  %s256, 128, %s258, %s247, 64, 64, 4
        $region40: #{tpu_custom_call.1} parent=31 // pred_fallthru
          _
      $region32: #{tpu_custom_call.1} parent=5 // pred_fallthru
        _
      %p264 = scmp.le.s32.totalorder 1, %s19
      %p265 = scmp.lt.s32.totalorder %s19, 3
      %p266 = pnand %p264, %p265
      %p267 = pneg %p266
      // Predicated region
      $region41: #{tpu_custom_call.1} parent=5 // pred_check
        _
      $region42: #{tpu_custom_call.1} parent=5 // pred_check_branch
        %269 = sbr.rel (%p266) target = $region44
      $region43: #{tpu_custom_call.1} parent=5 // pred_region
        %s270 = ssub.s32 %s19, 1
        %s271 = sand.u32 %s32, 1
        %s272 = scalar_lea.sflag [#allocation4], %s271
        %s273 = sand.u32 %s32, 1
        %s274 = smul.addr %s273, 8
        %s275 = scalar_lea.vmem [#allocation3], %s274
        // Predicated region
        $region45: #{tpu_custom_call.1} parent=43 // pred_check
          %p276 = pneg %p45
        $region46: #{tpu_custom_call.1} parent=43 // pred_check_branch
          %278 = sbr.rel (%p276) target = $region48
        $region47: #{tpu_custom_call.1} parent=43 // pred_region
          %279 = dma.done %s272, 128
        $region48: #{tpu_custom_call.1} parent=43 // pred_fallthru
          _
        %s280 = sand.u32 %s24, 1
        %s281 = scalar_lea.sflag [#allocation6], %s280
        %s282 = sand.u32 %s58, 1
        %s283 = smul.addr %s282, 8
        %s284 = scalar_lea.vmem [#allocation5], %s283
        // Predicated region
        $region49: #{tpu_custom_call.1} parent=43 // pred_check
          %p285 = pneg %p71
        $region50: #{tpu_custom_call.1} parent=43 // pred_check_branch
          %287 = sbr.rel (%p285) target = $region52
        $region51: #{tpu_custom_call.1} parent=43 // pred_region
          %288 = dma.done %s281, 128
        $region52: #{tpu_custom_call.1} parent=43 // pred_fallthru
          _
        // Predicated region
        $region53: #{tpu_custom_call.1} parent=43 // pred_check
          %p289 = pneg %p92
        $region54: #{tpu_custom_call.1} parent=43 // pred_check_branch
          %291 = sbr.rel (%p289) target = $region56
        $region55: #{tpu_custom_call.1} parent=43 // pred_region
          %292 = dma.done [#allocation6], 1536
        $region56: #{tpu_custom_call.1} parent=43 // pred_fallthru
          _
        %s293 = sand.u32 %s32, 1
        %s294 = scalar_lea.sflag [#allocation4], %s293
        %s295 = sand.u32 %s32, 1
        %s296 = smul.addr %s295, 8
        %s297 = scalar_lea.vmem [#allocation3], %s296
        %p298 = pneg %p45
        %p299 = pneg %p42
        %s300 = sand.u32 %s24, 1
        %s301 = scalar_lea.sflag [#allocation6], %s300
        %s302 = sand.u32 %s58, 1
        %s303 = smul.addr %s302, 8
        %s304 = scalar_lea.vmem [#allocation5], %s303
        %p305 = pneg %p71
        %p306 = pneg %p68
        %p307 = pneg %p92
        %p308 = pneg %p89
        %p309 = pneg %p113
        %p310 = pneg %p110
        %p311 = pneg %p134
        %p312 = pneg %p131
        %p313 = pneg %p155
        %p314 = pneg %p152
        %p315 = pneg %p181
        %p316 = pneg %p178
        %s317 = smul.u32 2, %s24
        %p318 = scmp.lt.s32.totalorder %s317, 3
        %s319 = scalar_select %p318, %s317, 3
        %s320 = smul.addr %s319, 8
        %s321 = scalar_lea.vmem %s6, %s320
        %s322 = smul.u32 2, %s24
        %s323 = smul.u32 2, %s24
        %s324 = smul.u32 2, %s24
        %p325 = scmp.lt.s32.totalorder %s324, 3
        %s326 = scalar_select %p325, %s324, 3
        %s327 = smul.addr %s326, 8
        %s328 = scalar_lea.vmem %s6, %s327
        %s329 = smul.u32 2, %s24
        %v331 = vld [vmem:[%s275] sm:$0xf]
        %v332 = vld [vmem:[%s275 + $0x4] sm:$0xf]
        %v333 = vunpack.c.l.bf16 %v331
        %v334 = vunpack.c.l.bf16 %v332
        %v335 = vld [vmem:[%s284] sm:$0xf]
        %v336 = vld [vmem:[%s284 + $0x4] sm:$0xf]
        %v337 = vunpack.c.l.bf16 %v335
        %v338 = vunpack.c.l.bf16 %v336
        %v339 = vsub.f32 %v333, %v337
        %v340 = vsub.f32 %v334, %v338
        %v341 = vand.u32 2147483647, %v339
        %v342 = vand.u32 2147483647, %v340
        %345 = vrot.lane.b32.xlu0 %v337, 32
        %v346 = vpop.permute.xlu0 %345
        %347 = vrot.lane.b32.xlu0 %v338, 32
        %v348 = vpop.permute.xlu0 %347
        %353 = vrot.lane.b32.xlu0 %v341, 64
        %v354 = vpop.permute.xlu0 %353
        %355 = vrot.lane.b32.xlu0 %v342, 64
        %v356 = vpop.permute.xlu0 %355
        %vm359 = vcmask 261120
        %v360 = vsel %vm359, %v333, %v346
        %v361 = vsel %vm359, %v334, %v348
        %vm362 = vcmask 523264
        %v363 = vsel %vm362, %v360, %v354
        %v364 = vsel %vm362, %v361, %v356
        %v365 = vpack.c.bf16 %v364, %v363
        %v366 = vld [vmem:[#allocation7] sm:$0xff]
        %v367 = vld [vmem:[#allocation7 + $0x8] sm:$0xff]
        %v368 = vld [vmem:[#allocation7 + $0x10] sm:$0xff]
        %v369 = vld [vmem:[#allocation7 + $0x18] sm:$0xff]
        %v370 = vld [vmem:[#allocation7 + $0x20] sm:$0xff]
        %v371 = vld [vmem:[#allocation7 + $0x28] sm:$0xff]
        %v372 = vld [vmem:[#allocation7 + $0x30] sm:$0xff]
        %v373 = vld [vmem:[#allocation7 + $0x38] sm:$0xff]
        %v374 = vld [vmem:[#allocation7 + $0x40] sm:$0xff]
        %v375 = vld [vmem:[#allocation7 + $0x48] sm:$0xff]
        %v376 = vld [vmem:[#allocation7 + $0x50] sm:$0xff]
        %v377 = vld [vmem:[#allocation7 + $0x58] sm:$0xff]
        %v378 = vld [vmem:[%s3] sm:$0x3]
        %v380 = vlaneseq
        %v381 = vshrl.u32 %v380, 7
        %v382 = vsub.s32 0, %v381
        %v383 = vrot.slane %v378, %v382
        %v384 = vlaneseq
        %v385 = vshrl.u32 %v384, 7
        %v386 = vsub.s32 1, %v385
        %v387 = vrot.slane %v378, %v386
        %v402 = vunpack.c.l.b16 %v366
        %v403 = vunpack.c.h.b16 %v366
        %v404 = vunpack.c.l.b16 %v367
        %v405 = vunpack.c.h.b16 %v367
        %v406 = vunpack.c.l.b16 %v368
        %v407 = vunpack.c.h.b16 %v368
        %v408 = vunpack.c.l.b16 %v369
        %v409 = vunpack.c.h.b16 %v369
        %v410 = vunpack.c.l.b16 %v370
        %v411 = vunpack.c.h.b16 %v370
        %v412 = vunpack.c.l.b16 %v371
        %v413 = vunpack.c.h.b16 %v371
        %v414 = vunpack.c.l.b16 %v372
        %v415 = vunpack.c.h.b16 %v372
        %v416 = vunpack.c.l.b16 %v373
        %v417 = vunpack.c.h.b16 %v373
        %v418 = vunpack.c.l.b16 %v374
        %v419 = vunpack.c.h.b16 %v374
        %v420 = vunpack.c.l.b16 %v375
        %v421 = vunpack.c.h.b16 %v375
        %v422 = vunpack.c.l.b16 %v376
        %v423 = vunpack.c.h.b16 %v376
        %v424 = vunpack.c.l.b16 %v377
        %v425 = vunpack.c.h.b16 %v377
        %v426 = vpack.c.b16 %v404, %v402
        %v427 = vpack.c.b16 %v405, %v403
        %v428 = vpack.c.b16 %v408, %v406
        %v429 = vpack.c.b16 %v409, %v407
        %v430 = vpack.c.b16 %v412, %v410
        %v431 = vpack.c.b16 %v413, %v411
        %v432 = vpack.c.b16 %v416, %v414
        %v433 = vpack.c.b16 %v417, %v415
        %v434 = vpack.c.b16 %v420, %v418
        %v435 = vpack.c.b16 %v421, %v419
        %v436 = vpack.c.b16 %v424, %v422
        %v437 = vpack.c.b16 %v425, %v423
        %vm450 = vcmask 785408
        %v452 = vsel %vm450, %v365, 0
        %454 = vmatprep.subr.bf16.mxu0 0
        %455 = vmatpush1.bf16.msra.mxu0 0
        %456 = vmatprep.subr.bf16.mxu0 0
        %457 = vmatpush1.bf16.msra.mxu0 0
        %458 = vmatprep.subr.bf16.mxu0 %v437
        %459 = vmatpush1.bf16.msra.mxu0 %v436
        %460 = vmatprep.subr.bf16.mxu0 %v435
        %461 = vmatpush1.bf16.msra.mxu0 %v434
        %462 = vmatprep.subr.bf16.mxu0 %v433
        %463 = vmatpush1.bf16.msra.mxu0 %v432
        %464 = vmatprep.subr.bf16.mxu0 %v431
        %465 = vmatpush1.bf16.msra.mxu0 %v430
        %466 = vmatprep.subr.bf16.mxu0 %v429
        %467 = vmatpush1.bf16.msra.mxu0 %v428
        %468 = vmatprep.subr.bf16.mxu0 %v427
        %469 = vmatpush1.bf16.msra.mxu0 %v426
        %470 = vmatprep.subr.bf16.mxu0 0
        %471 = vmatpush2.bf16.msra.mxu0 0
        %472 = vmatprep.subr.bf16.mxu0 0
        %473 = vmatpush2.bf16.msra.mxu0 0
        %474 = vmatprep.subr.bf16.mxu0 0
        %475 = vmatpush2.bf16.msra.mxu0 0
        %476 = vmatprep.subr.bf16.mxu0 0
        %477 = vmatpush2.bf16.msra.mxu0 0
        %478 = vmatprep.subr.bf16.mxu0 0
        %479 = vmatpush2.bf16.msra.mxu0 0
        %480 = vmatprep.subr.bf16.mxu0 0
        %481 = vmatpush2.bf16.msra.mxu0 0
        %482 = vmatprep.subr.bf16.mxu0 0
        %483 = vmatpush2.bf16.msra.mxu0 0
        %484 = vmatprep.subr.bf16.mxu0 0
        %485 = vmatpush2.bf16.msra.mxu0 0
        %486 = vmatprep.mubr.bf16.mxu0 0
        %487 = vmatmul.mubr.bf16.gmra.mxu0 %v452
        %v488 = vpop.f32.mrf.mxu0
        %v489 = vadd.f32 %v383, %v488
        %v490 = vpop.f32.mrf.mxu0
        %v491 = vadd.f32 %v387, %v490
        %v492 = vpop.f32.mrf.mxu0
        %v493 = vadd.f32 %v383, %v492
        %v494 = vpop.f32.mrf.mxu0
        %v495 = vadd.f32 %v387, %v494
        %496 = vdwg.mxu0
        %v497 = vmax.f32 %v489, 0.0
        %v498 = vmax.f32 %v491, 0.0
        %v499 = vmax.f32 %v493, 0.0
        %v500 = vmax.f32 %v495, 0.0
        %v501 = vld [vmem:[%s4] sm:$0x3]
        %v503 = vlaneseq
        %v504 = vshrl.u32 %v503, 7
        %v505 = vsub.s32 0, %v504
        %v506 = vrot.slane %v501, %v505
        %v507 = vlaneseq
        %v508 = vshrl.u32 %v507, 7
        %v509 = vsub.s32 1, %v508
        %v510 = vrot.slane %v501, %v509
        %v513 = vmul.f32 %v497, %v506
        %v514 = vmul.f32 %v498, %v510
        %v515 = vmul.f32 %v499, %v506
        %v516 = vmul.f32 %v500, %v510
        %v517 = vadd.f32 %v513, %v514
        %518 = vadd.xlane.f32.xlu0 %v517
        %v519 = vpop.xlane.xlu0 %518
        %v520 = vadd.f32 %v515, %v516
        %521 = vadd.xlane.f32.xlu0 %v520
        %v522 = vpop.xlane.xlu0 %521
        %s523 = sld [smem:[#allocation2]]
        %v524 = vstv %s523
        %v525 = vadd.f32 %v519, %v524
        %v526 = vadd.f32 %v522, %v524
        %v527 = vxor.u32 %v525, 2147483648
        %v528 = vxor.u32 %v526, 2147483648
        %v529 = vmul.f32 %v527, 1.442695
        %v530 = vpow.pop %v529
        %v531 = vmul.f32 %v528, 1.442695
        %v532 = vpow.pop %v531
        %v533 = vadd.f32 %v530, 1.0
        %v534 = vadd.f32 %v532, 1.0
        %v535 = vrcp.pop %v533
        %v536 = vmul.f32 1.0, %v535
        %v537 = vrcp.pop %v534
        %v538 = vmul.f32 1.0, %v537
        %vm539 = vcmask 7168
        %540 = vst.msk [vmem:[%s328] sm:$0xff] %vm539, %v536
        %541 = vst.msk [vmem:[%s328 + $0x8] sm:$0xff] %vm539, %v538
        %s542 = smul.u32 2, %s24
        %p543 = scmp.lt.s32.totalorder %s542, 3
        %s544 = scalar_select %p543, %s542, 3
        %s545 = smul.addr %s544, 8
        %s546 = scalar_lea.vmem %s6, %s545
        // Predicated region
        $region57: #{tpu_custom_call.1} parent=43 // pred_check
          %p547 = pneg %p178
        $region58: #{tpu_custom_call.1} parent=43 // pred_check_branch
          %549 = sbr.rel (%p547) target = $region60
        $region59: #{tpu_custom_call.1} parent=43 // pred_region
          %s550 = smul.u32 2, %s24
        $region60: #{tpu_custom_call.1} parent=43 // pred_fallthru
          _
      $region44: #{tpu_custom_call.1} parent=5 // pred_fallthru
        _
      %p551 = scmp.le.s32.totalorder 2, %s19
      // Predicated region
      $region61: #{tpu_custom_call.1} parent=5 // pred_check
        %p552 = pneg %p551
      $region62: #{tpu_custom_call.1} parent=5 // pred_check_branch
        %554 = sbr.rel (%p552) target = $region64
      $region63: #{tpu_custom_call.1} parent=5 // pred_region
        %s555 = ssub.s32 %s19, 2
        // Predicated region
        $region65: #{tpu_custom_call.1} parent=63 // pred_check
          %p556 = pneg %p184
        $region66: #{tpu_custom_call.1} parent=63 // pred_check_branch
          %558 = sbr.rel (%p556) target = $region68
        $region67: #{tpu_custom_call.1} parent=63 // pred_region
          %s559 = smul.u32 2, %s25
          %p560 = scmp.lt.s32.totalorder %s559, 3
          %s561 = scalar_select %p560, %s559, 3
          %s562 = smul.addr %s561, 8
          %s563 = scalar_lea.vmem %s6, %s562
        $region68: #{tpu_custom_call.1} parent=63 // pred_fallthru
          _
      $region64: #{tpu_custom_call.1} parent=5 // pred_fallthru
        _
    $region6: #{tpu_custom_call.1} parent=1 // loop_footer
      %s23 = sadd.s32 1, %s19
    $region7: #{tpu_custom_call.1} parent=1 // loop_footer_branch
      %18 = sbr.rel target = $region3
    $region8: #{tpu_custom_call.1} parent=1 // loop_exit
      _
    %564 = vsyncpa [#allocation4], 1
    %s565 = scalar_lea.sflag [#allocation4], 1
    %566 = vsyncpa %s565, 1
    %567 = vsyncpa [#allocation6], 1
    %s568 = scalar_lea.sflag [#allocation6], 1
    %569 = vsyncpa %s568, 1

</llo_original>
